<compile_context>
chip_gen: v7x
topology: tpu7x:2x2x1
jax: 0.10.0
libtpu: 0.0.40
codegen_flags: <defaults>
</compile_context>

<pallas_src>
import functools
import numpy as np
import jax
import jax.numpy as jnp
from jax import lax
from jax.experimental import pallas as pl
from jax.experimental.pallas import tpu as pltpu

_SUBLANE = 8


def _hw_config():
    """Generation-aware VMEM budget: v5e/v6e have 128 MiB physical VMEM per
    TensorCore, v7x only 64 MiB.  Size the scoped vmem limit and the per-block
    byte budget accordingly (fallback = conservative v7x-style settings)."""
    try:
        vmem_cap = int(pltpu.get_tpu_info().vmem_capacity_bytes)
    except Exception:
        vmem_cap = 64 * 1024 * 1024
    if vmem_cap >= 96 * 1024 * 1024:      # v5e / v6e (128 MiB physical)
        return {"vmem_limit": 64 * 1024 * 1024, "block_bytes": 8 * 1024 * 1024}
    # v7x (64 MiB physical per TensorCore): leave headroom for double-buffering.
    return {"vmem_limit": 28 * 1024 * 1024, "block_bytes": 4 * 1024 * 1024}


def _row_tile(n_rows, row_bytes, block_bytes, max_rows=None, min_grid=2):
    """Largest row tile (multiple of 8) that keeps one block under `block_bytes`.
    Keeps >= `min_grid` grid steps when possible so v7x's two TensorCores both
    get work.  If the whole array fits in one tile, use the full extent (a block
    equal to the array is always a legal block shape)."""
    tile = max(_SUBLANE, (block_bytes // max(1, row_bytes)) // _SUBLANE * _SUBLANE)
    if max_rows is not None:
        tile = min(tile, max(int(max_rows), _SUBLANE))
    if min_grid > 1 and n_rows > min_grid * _SUBLANE:
        per_step = -(-n_rows // min_grid)                    # cdiv(n_rows, min_grid)
        per_step = -(-per_step // _SUBLANE) * _SUBLANE       # round up to 8
        tile = min(tile, per_step)
    if n_rows <= tile:
        return int(n_rows)                                   # single full block
    return int(tile)                                         # ragged tail handled by Pallas


# ---------------------------------------------------------------------------
# Kernel 1: projection score  y = tanh( x . (p / ||p||) )
# ---------------------------------------------------------------------------
def _score_kernel(x_ref, w_ref, score_ref):
    # w_ref already holds (p / ||p||_2) as a (C, 1) column (folded once in the
    # wrapper).  MXU dot keeps the VALU/XLU slots clear; tanh goes to the EUP.
    score_ref[...] = jnp.tanh(
        jnp.dot(x_ref[...].astype(jnp.float32), w_ref[...],
                preferred_element_type=jnp.float32))


def compute_scores(x, weight):
    """score = tanh((x @ p) / ||p||_2), returned as float32 of shape (N,)."""
    N, C = x.shape
    itemsize = jnp.dtype(x.dtype).itemsize
    cfg = _hw_config()
    # Row tile purely from the byte budget (MiB-range blocks), >= 2 grid steps.
    tn = _row_tile(N, C * itemsize, cfg["block_bytes"])

    # Pre-fold the norm (tiny (1,C) op) so the kernel skips the per-step reduce+rsqrt.
    w32 = weight.astype(jnp.float32).reshape(1, C)
    w_col = (w32 * lax.rsqrt(jnp.sum(w32 * w32))).reshape(C, 1)

    cost = pl.CostEstimate(flops=2 * N * C, transcendentals=N,
                           bytes_accessed=N * C * itemsize + N * 4 + C * 4)

    # TODO(synk): score output blocks are lane-sparse ((tn, 1)); acceptable since the
    #             writeback is N*4 bytes vs N*C*itemsize read traffic.  A lane-dense
    #             (grid, tn) slab would need an in-kernel transpose of the MXU result.
    score = pl.pallas_call(
        _score_kernel,
        out_shape=jax.ShapeDtypeStruct((N, 1), jnp.float32),
        grid_spec=pltpu.PrefetchScalarGridSpec(
            num_scalar_prefetch=0,
            grid=(pl.cdiv(N, tn),),
            in_specs=[
                pl.BlockSpec((tn, C), lambda i: (i, 0)),
                pl.BlockSpec((C, 1), lambda i: (0, 0)),
            ],
            out_specs=pl.BlockSpec((tn, 1), lambda i: (i, 0)),
        ),
        compiler_params=pltpu.CompilerParams(
            dimension_semantics=("parallel",),   # rows independent -> 2 TCs on v7x
            vmem_limit_bytes=cfg["vmem_limit"],
        ),
        cost_estimate=cost,
    )(x, w_col)
    return score[:, 0]


# ---------------------------------------------------------------------------
# Kernel 2a: fused gather + gate, fast path (x resident in VMEM)
# ---------------------------------------------------------------------------
def _gather_scale_vmem_kernel(perm_ref, s_ref, x_ref, out_ref, *, n_sel, tile):
    base = pl.program_id(0) * tile

    # Gather rows from the VMEM-resident copy of x.  x was brought in by one
    # contiguous HBM->VMEM copy (full HBM bandwidth) instead of 128-byte
    # per-row DMAs; the index map is constant so it is fetched only once.
    @pl.loop(0, tile)
    def _(r):
        src = perm_ref[jnp.minimum(base + r, n_sel - 1)]     # clamp ragged tail
        out_ref[pl.ds(r, 1), :] = x_ref[pl.ds(src, 1), :]

    # Vectorized gate by tanh(score)[perm].  Ragged tail rows are clipped by
    # Pallas on writeback and never land in HBM.
    out_ref[...] = (out_ref[...].astype(jnp.float32) * s_ref[...]).astype(out_ref.dtype)


# ---------------------------------------------------------------------------
# Kernel 2b: fused gather + gate, HBM path (double-buffered per-row DMA gather)
# ---------------------------------------------------------------------------
def _gather_scale_hbm_kernel(perm_ref, s_ref, x_hbm, out_ref, buf, sem, *, n_sel, tile):
    i = pl.program_id(0)
    nsteps = pl.num_programs(0)

    def issue(step, slot):
        base = step * tile

        @pl.loop(0, tile)
        def _(r):
            # Clamp so a ragged last tile never produces an out-of-bounds DMA.
            src = perm_ref[jnp.minimum(base + r, n_sel - 1)]
            pltpu.make_async_copy(x_hbm.at[src], buf.at[slot, r], sem.at[slot]).start()

    # Prime the pipeline, then keep the DMA engine one tile ahead of compute.
    @pl.when(i == 0)
    def _():
        issue(0, 0)

    @pl.when(i + 1 < nsteps)
    def _():
        issue(i + 1, (i + 1) % 2)

    # Single wait whose byte count equals the sum of this slot's row-copy signals
    # (replaces `tile` serialized per-row waits); per-slot semaphores keep the
    # double-buffered signals separate.
    slot = i % 2
    pltpu.make_async_copy(x_hbm.at[pl.ds(0, tile)], buf.at[slot], sem.at[slot]).wait()

    out_ref[...] = (buf[slot].astype(jnp.float32) * s_ref[...]).astype(out_ref.dtype)


def gather_and_scale(x, score, perm, force_hbm_path=False, tile_override=None):
    """x[perm] * score[perm][:, None] without materializing x[perm] in HBM."""
    N, C = x.shape
    K = int(perm.shape[0])
    if K == 0:                                # guard: no selected nodes
        return jnp.zeros((0, C), dtype=x.dtype)
    itemsize = jnp.dtype(x.dtype).itemsize
    cfg = _hw_config()

    # Large row tiles (>=1024 when K allows) keep many row copies in flight and
    # amortize the ~0.35 us per-grid-step overhead; buf stays tiny in VMEM.
    tile = _row_tile(K, C * itemsize, cfg["block_bytes"], max_rows=2048)
    if tile_override is not None:
        tile = int(tile_override)

    s_sel = jnp.take(score, perm, axis=0).reshape(-1, 1).astype(jnp.float32)
    perm_i32 = perm.astype(jnp.int32)

    cost = pl.CostEstimate(flops=K * C, transcendentals=0,
                           bytes_accessed=2 * K * C * itemsize + 2 * K * 4)

    # Fast path threshold: x (conservatively double-buffered) + small blocks must
    # stay under the generation-aware scoped VMEM limit.
    x_bytes = N * C * itemsize
    fits_vmem = x_bytes <= max(0, (cfg["vmem_limit"] - 8 * 1024 * 1024) // 2)

    # TODO(synk): for C < 128 the (tile, C) output blocks are lane-sparse; a
    #             lane-folded (tile*C/128, 128) out layout would need careful
    #             ragged-tail masking and is left out here.

    if fits_vmem and not force_hbm_path:
        kernel = functools.partial(_gather_scale_vmem_kernel, n_sel=K, tile=tile)
        return pl.pallas_call(
            kernel,
            out_shape=jax.ShapeDtypeStruct((K, C), x.dtype),
            grid_spec=pltpu.PrefetchScalarGridSpec(
                num_scalar_prefetch=1,                               # perm -> SMEM
                grid=(pl.cdiv(K, tile),),
                in_specs=[
                    pl.BlockSpec((tile, 1), lambda i, _p: (i, 0)),   # selected scores
                    pl.BlockSpec((N, C), lambda i, _p: (0, 0)),      # x resident in VMEM
                ],
                out_specs=pl.BlockSpec((tile, C), lambda i, _p: (i, 0)),
            ),
            compiler_params=pltpu.CompilerParams(
                dimension_semantics=("parallel",),
                vmem_limit_bytes=cfg["vmem_limit"],
            ),
            cost_estimate=cost,
        )(perm_i32, s_sel, x)

    kernel = functools.partial(_gather_scale_hbm_kernel, n_sel=K, tile=tile)
    return pl.pallas_call(
        kernel,
        out_shape=jax.ShapeDtypeStruct((K, C), x.dtype),
        grid_spec=pltpu.PrefetchScalarGridSpec(
            num_scalar_prefetch=1,                                   # perm -> SMEM
            grid=(pl.cdiv(K, tile),),
            in_specs=[
                pl.BlockSpec((tile, 1), lambda i, _p: (i, 0)),       # selected scores
                pl.BlockSpec(memory_space=pl.ANY),                   # x stays in HBM
            ],
            out_specs=pl.BlockSpec((tile, C), lambda i, _p: (i, 0)),
            scratch_shapes=[
                pltpu.VMEM((2, tile, C), x.dtype),                   # double buffer
                pltpu.SemaphoreType.DMA((2,)),                       # per-slot sems
            ],
        ),
        compiler_params=pltpu.CompilerParams(
            # Cross-grid-step prefetch requires sequential grid execution.
            dimension_semantics=("arbitrary",),
            vmem_limit_bytes=cfg["vmem_limit"],
        ),
        cost_estimate=cost,
    )(perm_i32, s_sel, x)


# ---------------------------------------------------------------------------
# topk() (min_score=None branch) — mirrors the torch reference (host glue)
# ---------------------------------------------------------------------------
def topk_perm(score, ratio, batch_np):
    num_nodes = np.bincount(batch_np)                       # scatter_add of ones
    B = num_nodes.shape[0]
    max_n = int(num_nodes.max())
    cum = np.concatenate([[0], np.cumsum(num_nodes)[:-1]])

    index = np.arange(batch_np.shape[0]) - cum[batch_np] + batch_np * max_n
    dense = jnp.full((B * max_n,), -2.0, dtype=score.dtype)
    dense = dense.at[jnp.asarray(index)].set(score)
    dense = dense.reshape(B, max_n)

    perm = jnp.argsort(-dense, axis=-1)                     # sort descending
    perm = perm + jnp.asarray(cum, dtype=perm.dtype).reshape(-1, 1)
    perm = perm.reshape(-1)

    k = np.ceil(ratio * num_nodes.astype(np.float64)).astype(np.int64)
    mask = np.concatenate([np.arange(k[i]) + i * max_n for i in range(B)])
    return perm[jnp.asarray(mask)]


# ---------------------------------------------------------------------------
# filter_adj — mirrors the torch reference
# TODO(synk): edge filtering has a data-dependent output shape; no clean static
#             Pallas equivalent, so it is done with eager JAX boolean indexing.
# ---------------------------------------------------------------------------
def filter_adj_jax(edge_index, edge_attr, perm, num_nodes):
    mask = jnp.full((num_nodes,), -1, dtype=jnp.int32)
    mask = mask.at[perm].set(jnp.arange(perm.shape[0], dtype=jnp.int32))
    row, col = edge_index[0], edge_index[1]
    row, col = mask[row], mask[col]
    keep = (row >= 0) & (col >= 0)
    row, col = row[keep], col[keep]
    if edge_attr is not None:
        edge_attr = edge_attr[keep]
    return jnp.stack([row, col], axis=0), edge_attr


# ---------------------------------------------------------------------------
# TopKPooling.forward
# ---------------------------------------------------------------------------
def topk_pooling_forward(x, edge_index, edge_attr, batch, batch_np, weight, ratio):
    score = compute_scores(x, weight)                 # Pallas: projection + tanh
    perm = topk_perm(score, ratio, batch_np)          # per-graph top-k indices
    x_out = gather_and_scale(x, score, perm)          # Pallas: fused gather + gate
    batch_out = jnp.take(batch, perm, axis=0)
    ei_out, ea_out = filter_adj_jax(edge_index, edge_attr, perm,
                                    num_nodes=score.shape[0])
    return x_out, ei_out, ea_out, batch_out, perm


if __name__ == "__main__":
    key = jax.random.PRNGKey(0)
    k1, k2, k3 = jax.random.split(key, 3)

    C = 32                 # channels
    ratio = 0.5
    num_graphs = 2
    nodes_per_graph = 32
    N = num_graphs * nodes_per_graph    # 64 nodes

    x = jax.random.normal(k1, (N, C), dtype=jnp.float32)
    batch_np = np.repeat(np.arange(num_graphs), nodes_per_graph)
    batch = jnp.asarray(batch_np, dtype=jnp.int32)

    # bidirectional chain edges within each graph
    rows, cols = [], []
    for g in range(num_graphs):
        base = g * nodes_per_graph
        for i in range(nodes_per_graph - 1):
            rows += [base + i, base + i + 1]
            cols += [base + i + 1, base + i]
    edge_index = jnp.asarray(np.stack([rows, cols]), dtype=jnp.int32)
    edge_attr = jax.random.normal(k2, (edge_index.shape[1],), dtype=jnp.float32)

    # Parameter init: torch_geometric's uniform(size, w) -> U(-1/sqrt(C), 1/sqrt(C))
    bound = 1.0 / np.sqrt(C)
    weight = jax.random.uniform(k3, (1, C), minval=-bound, maxval=bound,
                                dtype=jnp.float32)

    out = topk_pooling_forward(x, edge_index, edge_attr, batch, batch_np,
                               weight, ratio)
    jax.block_until_ready(out)
    x_out, ei_out, ea_out, batch_out, perm = out
    K = num_graphs * int(np.ceil(ratio * nodes_per_graph))   # 32 pooled nodes
    assert x_out.shape == (K, C) and batch_out.shape == (K,) and perm.shape == (K,)

    # Cross-check the Pallas path against a plain-JAX reference of the forward.
    w32 = weight.astype(jnp.float32)
    score_ref = jnp.tanh((x * w32).sum(-1) / jnp.sqrt(jnp.sum(w32 * w32)))
    x_ref = jnp.take(x, perm, axis=0) * jnp.take(score_ref, perm)[:, None]
    np.testing.assert_allclose(np.asarray(x_out), np.asarray(x_ref),
                               rtol=1e-5, atol=1e-5)

    # Also exercise the HBM double-buffered gather path (tile forced small so the
    # cross-step prefetch actually pipelines across multiple grid steps).
    score = compute_scores(x, weight)
    x_hbm = gather_and_scale(x, score, perm, force_hbm_path=True, tile_override=8)
    jax.block_until_ready(x_hbm)
    np.testing.assert_allclose(np.asarray(x_hbm), np.asarray(x_ref),
                               rtol=1e-5, atol=1e-5)

    print("KERNEL_OK")
</pallas_src>

<mosaic_0001>
module attributes {stable_mosaic.version = 11 : i64} {
  func.func @_score_kernel(%arg0: i32, %arg1: memref<32x32xf32, #tpu.memory_space<vmem>>, %arg2: memref<32x1xf32, #tpu.memory_space<vmem>>, %arg3: memref<32x1xf32, #tpu.memory_space<vmem>>) attributes {dimension_semantics = [#tpu.dimension_semantics<parallel>], iteration_bounds = array<i64: 2>, scalar_prefetch = 0 : i64, scratch_operands = 0 : i64, tpu.core_type = #tpu.core_type<tc>, window_params = [{transform_indices = @transform_0, window_bounds = array<i64: 32, 32>}, {pipeline_mode = #tpu.pipeline_mode<synchronous>, transform_indices = @transform_1, window_bounds = array<i64: 32, 1>}, {transform_indices = @transform_2, window_bounds = array<i64: 32, 1>}]} {
    %c0 = arith.constant 0 : index
    %c0_0 = arith.constant 0 : index
    %0 = vector.load %arg1[%c0, %c0_0] : memref<32x32xf32, #tpu.memory_space<vmem>>, vector<32x32xf32>
    %c0_1 = arith.constant 0 : index
    %c0_2 = arith.constant 0 : index
    %1 = vector.load %arg2[%c0_1, %c0_2] : memref<32x1xf32, #tpu.memory_space<vmem>>, vector<32x1xf32>
    %cst = arith.constant dense<0.000000e+00> : vector<32x1xf32>
    %2 = tpu.matmul %0, %1, %cst {dimension_numbers = #tpu.dot_dimension_numbers<[1], [0], [0], [1], [0, 0, 1, 1], [], []>} : vector<32x32xf32>, vector<32x1xf32>, vector<32x1xf32> -> vector<32x1xf32>
    %3 = math.tanh %2 : vector<32x1xf32>
    %c0_3 = arith.constant 0 : index
    %c0_4 = arith.constant 0 : index
    %4 = vector.load %arg3[%c0_3, %c0_4] : memref<32x1xf32, #tpu.memory_space<vmem>>, vector<32x1xf32>
    tpu.vector_store %arg3[%c0_3, %c0_4], %3 {strides = array<i32>} : memref<32x1xf32, #tpu.memory_space<vmem>>, vector<32x1xf32>,
    return
  }
  func.func @transform_0(%arg0: i32) -> (i32, i32) {
    %c0_i32 = arith.constant 0 : i32
    %c0_i32_0 = arith.constant 0 : i32
    return %arg0, %c0_i32 : i32, i32
  }
  func.func @transform_1(%arg0: i32) -> (i32, i32) {
    %c0_i32 = arith.constant 0 : i32
    %c0_i32_0 = arith.constant 0 : i32
    %c0_i32_1 = arith.constant 0 : i32
    return %c0_i32, %c0_i32_0 : i32, i32
  }
  func.func @transform_2(%arg0: i32) -> (i32, i32) {
    %c0_i32 = arith.constant 0 : i32
    %c0_i32_0 = arith.constant 0 : i32
    return %arg0, %c0_i32 : i32, i32
  }
}

</mosaic_0001>

<llo_original>
// kernel: tpu_custom_call.1
$region0: #{tpu_custom_call.1}
  #allocation0 [shape = 'u32[]', space=smem, size = 0x4, offset = 0x4, fixed_abs, tag = 'smem constant byte address 0x4 - core index']
  #allocation1 [shape = 'u32[144,128]{1,0:T(1,128)}', space=vmem, size = 0x12000, scoped, tag = 'internal scratch']
  %s0 = inlined_call_operand.vmem [shape: f32[64,32], index: 0, kind: input, shape index: {}]
  %s1 = inlined_call_operand.vmem [shape: f32[32,1], index: 1, kind: input, shape index: {}]
  %s2 = inlined_call_operand.vmem [shape: f32[64,1], index: 2, kind: output, shape index: {}]
  %s3 = sld [smem:[#allocation0]]
  $region41: #{tpu_custom_call.1} parent=0
    _
  %s5 = ssub.s32 1, %s3
  %s6 = scalar_select 0, %s5, %s3
  loop: start=0, step=1, limit=4
  $region2: #{tpu_custom_call.1} parent=0 // loop_pre_header
    _
  $region3: #{tpu_custom_call.1} parent=0 // loop_header
    %s8 = sphi 0, %s12
    %p9 = scmp.ge.s32.totalorder %s8, 4
    %s18 = sphi 0, %s20
    %s21 = sphi 0, %s18
    %s22 = sphi 0, %s21
    %s38 = sphi 0, %s22
    %s42 = sphi 0, %s42
    %s44 = sphi 0, %s42
    %s45 = sphi 0, %s44
    %s59 = sphi 0, %s45
    %s65 = sphi 0, %s67
    %s68 = sphi 0, %s65
    %s69 = sphi 0, %s68
    %s85 = sphi 0, %s69
  $region4: #{tpu_custom_call.1} parent=0 // loop_header_branch
    %11 = sbr.rel (%p9) target = $region8
  $region5: #{tpu_custom_call.1} parent=0 // loop_body
    %s13 = ssub.s32 %s8, 1
    %s14 = ssub.s32 %s8, 2
    %s15 = sadd.s32 %s8, 1
    %s16 = ssub.s32 %s8, %s15
    %p17 = scmp.eq.s32.totalorder %s16, 0
    %s19 = sadd.s32 %s18, 1
    %s20 = scalar_select %p17, %s18, %s19
    %p23 = pneg %p17
    %p24 = scmp.eq.s32.totalorder %s8, 1
    %p25 = por %p23, %p24
    %p26 = scmp.ne.s32.totalorder %s18, %s21
    %p27 = scmp.eq.s32.totalorder %s8, 0
    %p28 = por %p26, %p27
    %p29 = scmp.ne.s32.totalorder %s18, %s21
    %p30 = scmp.eq.s32.totalorder %s13, 1
    %p31 = por %p29, %p30
    %p32 = scmp.ne.s32.totalorder %s21, %s22
    %p33 = scmp.eq.s32.totalorder %s13, 0
    %p34 = por %p32, %p33
    %p35 = scmp.ne.s32.totalorder %s21, %s22
    %p36 = scmp.eq.s32.totalorder %s14, 1
    %p37 = por %p35, %p36
    %p39 = scmp.ne.s32.totalorder %s22, %s38
    %p40 = scmp.eq.s32.totalorder %s14, 0
    %p41 = por %p39, %p40
    %s43 = sadd.s32 %s42, 1
    %p46 = scmp.eq.s32.totalorder %s8, 1
    %p47 = scmp.ne.s32.totalorder %s42, %s44
    %p48 = scmp.eq.s32.totalorder %s8, 0
    %p49 = por %p47, %p48
    %p50 = scmp.ne.s32.totalorder %s42, %s44
    %p51 = scmp.eq.s32.totalorder %s13, 1
    %p52 = por %p50, %p51
    %p53 = scmp.ne.s32.totalorder %s44, %s45
    %p54 = scmp.eq.s32.totalorder %s13, 0
    %p55 = por %p53, %p54
    %p56 = scmp.ne.s32.totalorder %s44, %s45
    %p57 = scmp.eq.s32.totalorder %s14, 1
    %p58 = por %p56, %p57
    %p60 = scmp.ne.s32.totalorder %s45, %s59
    %p61 = scmp.eq.s32.totalorder %s14, 0
    %p62 = por %p60, %p61
    %s63 = ssub.s32 %s8, %s15
    %p64 = scmp.eq.s32.totalorder %s63, 0
    %s66 = sadd.s32 %s65, 1
    %s67 = scalar_select %p64, %s65, %s66
    %p70 = pneg %p64
    %p71 = scmp.eq.s32.totalorder %s8, 1
    %p72 = por %p70, %p71
    %p73 = scmp.ne.s32.totalorder %s65, %s68
    %p74 = scmp.eq.s32.totalorder %s8, 0
    %p75 = por %p73, %p74
    %p76 = scmp.ne.s32.totalorder %s65, %s68
    %p77 = scmp.eq.s32.totalorder %s13, 1
    %p78 = por %p76, %p77
    %p79 = scmp.ne.s32.totalorder %s68, %s69
    %p80 = scmp.eq.s32.totalorder %s13, 0
    %p81 = por %p79, %p80
    %p82 = scmp.ne.s32.totalorder %s68, %s69
    %p83 = scmp.eq.s32.totalorder %s14, 1
    %p84 = por %p82, %p83
    %p86 = scmp.ne.s32.totalorder %s69, %s85
    %p87 = scmp.eq.s32.totalorder %s14, 0
    %p88 = por %p86, %p87
    %p89 = scmp.le.s32.totalorder 1, %s8
    %p90 = scmp.lt.s32.totalorder %s8, 3
    %p91 = pnand %p89, %p90
    %p92 = pneg %p91
    // Predicated region
    $region9: #{tpu_custom_call.1} parent=5 // pred_check
      _
    $region10: #{tpu_custom_call.1} parent=5 // pred_check_branch
      %94 = sbr.rel (%p91) target = $region12
    $region11: #{tpu_custom_call.1} parent=5 // pred_region
      %s95 = ssub.s32 %s8, 1
      // Predicated region
      $region13: #{tpu_custom_call.1} parent=11 // pred_check
        %p96 = pneg %p55
      $region14: #{tpu_custom_call.1} parent=11 // pred_check_branch
        %98 = sbr.rel (%p96) target = $region16
      $region15: #{tpu_custom_call.1} parent=11 // pred_region
        _
      $region16: #{tpu_custom_call.1} parent=11 // pred_fallthru
        _
    $region12: #{tpu_custom_call.1} parent=5 // pred_fallthru
      _
    %p99 = scmp.lt.s32.totalorder %s8, 2
    // Predicated region
    $region17: #{tpu_custom_call.1} parent=5 // pred_check
      %p100 = pneg %p99
    $region18: #{tpu_custom_call.1} parent=5 // pred_check_branch
      %102 = sbr.rel (%p100) target = $region20
    $region19: #{tpu_custom_call.1} parent=5 // pred_region
      // Predicated region
      $region21: #{tpu_custom_call.1} parent=19 // pred_check
        %p103 = pneg %p28
      $region22: #{tpu_custom_call.1} parent=19 // pred_check_branch
        %105 = sbr.rel (%p103) target = $region24
      $region23: #{tpu_custom_call.1} parent=19 // pred_region
        %s106 = smul.u32 4, %s8
        %p107 = scmp.lt.s32.totalorder %s106, 7
        %s108 = scalar_select %p107, %s106, 7
        %s109 = smul.addr %s108, 8
        %s110 = scalar_lea.vmem %s0, %s109
        %s111 = smul.u32 4, %s8
      $region24: #{tpu_custom_call.1} parent=19 // pred_fallthru
        _
    $region20: #{tpu_custom_call.1} parent=5 // pred_fallthru
      _
    %p112 = scmp.le.s32.totalorder 1, %s8
    %p113 = scmp.lt.s32.totalorder %s8, 3
    %p114 = pnand %p112, %p113
    %p115 = pneg %p114
    // Predicated region
    $region25: #{tpu_custom_call.1} parent=5 // pred_check
      _
    $region26: #{tpu_custom_call.1} parent=5 // pred_check_branch
      %117 = sbr.rel (%p114) target = $region28
    $region27: #{tpu_custom_call.1} parent=5 // pred_region
      %s118 = ssub.s32 %s8, 1
      %s119 = smul.u32 4, %s13
      %p120 = scmp.lt.s32.totalorder %s119, 7
      %s121 = scalar_select %p120, %s119, 7
      %s122 = smul.addr %s121, 8
      %s123 = scalar_lea.vmem %s0, %s122
      %p124 = pneg %p34
      %p125 = pneg %p31
      %p126 = pneg %p55
      %p127 = pneg %p52
      %p128 = pneg %p81
      %p129 = pneg %p78
      %s130 = smul.u32 4, %s13
      %p131 = scmp.lt.s32.totalorder %s130, 7
      %s132 = scalar_select %p131, %s130, 7
      %s133 = smul.addr %s132, 8
      %s134 = scalar_lea.vmem %s2, %s133
      %s135 = smul.u32 4, %s13
      %p136 = scmp.lt.s32.totalorder %s135, 7
      %s137 = scalar_select %p136, %s135, 7
      %s138 = smul.addr %s137, 8
      %s139 = scalar_lea.vmem %s0, %s138
      %s140 = smul.u32 4, %s13
      %s141 = smul.u32 4, %s13
      %p142 = scmp.lt.s32.totalorder %s141, 7
      %s143 = scalar_select %p142, %s141, 7
      %s144 = smul.addr %s143, 8
      %s145 = scalar_lea.vmem %s2, %s144
      %s146 = smul.u32 4, %s13
      %v147 = vld [vmem:[%s139] sm:$0xff]
      %v148 = vld [vmem:[%s139 + $0x8] sm:$0xff]
      %v149 = vld [vmem:[%s139 + $0x10] sm:$0xff]
      %v150 = vld [vmem:[%s139 + $0x18] sm:$0xff]
      %v151 = vld [vmem:[%s1] sm:$0xff]
      %v152 = vld [vmem:[%s1 + $0x8] sm:$0xff]
      %v153 = vld [vmem:[%s1 + $0x10] sm:$0xff]
      %v154 = vld [vmem:[%s1 + $0x18] sm:$0xff]
      %vm155 = vcmask 261120
      %v157 = vsel %vm155, %v147, 0
      %v160 = vsel %vm155, %v148, 0
      %v163 = vsel %vm155, %v149, 0
      %v166 = vsel %vm155, %v150, 0
      %168 = vmatprep.subr.mxu0 0.0
      %169 = vmatpush1.msra.mxu0 %v151
      %170 = vmatprep.subr.mxu0 0.0
      %171 = vmatpush1.msra.mxu0 %v152
      %172 = vmatprep.subr.mxu0 0.0
      %173 = vmatpush1.msra.mxu0 %v153
      %174 = vmatprep.subr.mxu0 0.0
      %175 = vmatpush1.msra.mxu0 %v154
      %176 = vmatprep.subr.mxu0 0.0
      %177 = vmatpush1.msra.mxu0 0.0
      %178 = vmatprep.subr.mxu0 0.0
      %179 = vmatpush1.msra.mxu0 0.0
      %180 = vmatprep.subr.mxu0 0.0
      %181 = vmatpush1.msra.mxu0 0.0
      %182 = vmatprep.subr.mxu0 0.0
      %183 = vmatpush1.msra.mxu0 0.0
      %184 = vmatprep.subr.mxu0 0.0
      %185 = vmatpush1.msra.mxu0 0.0
      %186 = vmatprep.subr.mxu0 0.0
      %187 = vmatpush1.msra.mxu0 0.0
      %188 = vmatprep.subr.mxu0 0.0
      %189 = vmatpush1.msra.mxu0 0.0
      %190 = vmatprep.subr.mxu0 0.0
      %191 = vmatpush1.msra.mxu0 0.0
      %192 = vmatprep.subr.mxu0 0.0
      %193 = vmatpush1.msra.mxu0 0.0
      %194 = vmatprep.subr.mxu0 0.0
      %195 = vmatpush1.msra.mxu0 0.0
      %196 = vmatprep.subr.mxu0 0.0
      %197 = vmatpush1.msra.mxu0 0.0
      %198 = vmatprep.subr.mxu0 0.0
      %199 = vmatpush1.msra.mxu0 0.0
      %200 = vmatprep.subr.mxu0 0.0
      %201 = vmatpush1.msra.mxu0 0.0
      %202 = vmatprep.subr.mxu0 0.0
      %203 = vmatpush1.msra.mxu0 0.0
      %204 = vmatprep.subr.mxu0 0.0
      %205 = vmatpush1.msra.mxu0 0.0
      %206 = vmatprep.subr.mxu0 0.0
      %207 = vmatpush1.msra.mxu0 0.0
      %208 = vmatprep.subr.mxu0 0.0
      %209 = vmatpush1.msra.mxu0 0.0
      %210 = vmatprep.subr.mxu0 0.0
      %211 = vmatpush1.msra.mxu0 0.0
      %212 = vmatprep.subr.mxu0 0.0
      %213 = vmatpush1.msra.mxu0 0.0
      %214 = vmatprep.subr.mxu0 0.0
      %215 = vmatpush1.msra.mxu0 0.0
      %216 = vmatprep.subr.mxu0 0.0
      %217 = vmatpush1.msra.mxu0 0.0
      %218 = vmatprep.subr.mxu0 0.0
      %219 = vmatpush1.msra.mxu0 0.0
      %220 = vmatprep.subr.mxu0 0.0
      %221 = vmatpush1.msra.mxu0 0.0
      %222 = vmatprep.subr.mxu0 0.0
      %223 = vmatpush1.msra.mxu0 0.0
      %224 = vmatprep.subr.mxu0 0.0
      %225 = vmatpush1.msra.mxu0 0.0
      %226 = vmatprep.subr.mxu0 0.0
      %227 = vmatpush1.msra.mxu0 0.0
      %228 = vmatprep.subr.mxu0 0.0
      %229 = vmatpush1.msra.mxu0 0.0
      %230 = vmatprep.subr.mxu0 0.0
      %231 = vmatpush1.msra.mxu0 0.0
      %232 = vmatprep.mubr.f32.mxu0 0.0
      %233 = vmatmul.mubr.f32.gmra.mrb[0].mxu0 %v157
      %v234 = vpop.f32.mrb[0].mxu0
      %v235 = vadd.f32 0.0, %v234
      %v236 = vpop.f32.mrb[0].mxu0
      %237 = vmatprep.mubr.f32.mxu0 0.0
      %238 = vmatmul.mubr.f32.gmra.mrb[0].mxu0 %v160
      %v239 = vpop.f32.mrb[0].mxu0
      %v240 = vadd.f32 0.0, %v239
      %v241 = vpop.f32.mrb[0].mxu0
      %242 = vmatprep.mubr.f32.mxu0 0.0
      %243 = vmatmul.mubr.f32.gmra.mrb[0].mxu0 %v163
      %v244 = vpop.f32.mrb[0].mxu0
      %v245 = vadd.f32 0.0, %v244
      %v246 = vpop.f32.mrb[0].mxu0
      %247 = vmatprep.mubr.f32.mxu0 0.0
      %248 = vmatmul.mubr.f32.gmra.mrb[0].mxu0 %v166
      %v249 = vpop.f32.mrb[0].mxu0
      %v250 = vadd.f32 0.0, %v249
      %v251 = vpop.f32.mrb[0].mxu0
      %252 = vdwg.mxu0
      %v253 = vtanh.pop %v235
      %v254 = vtanh.pop %v240
      %v255 = vtanh.pop %v245
      %v256 = vtanh.pop %v250
      %vm257 = vcmask 7168
      %258 = vst.msk [vmem:[%s145] sm:$0xff] %vm257, %v253
      %259 = vst.msk [vmem:[%s145 + $0x8] sm:$0xff] %vm257, %v254
      %260 = vst.msk [vmem:[%s145 + $0x10] sm:$0xff] %vm257, %v255
      %261 = vst.msk [vmem:[%s145 + $0x18] sm:$0xff] %vm257, %v256
      %s262 = smul.u32 4, %s13
      %p263 = scmp.lt.s32.totalorder %s262, 7
      %s264 = scalar_select %p263, %s262, 7
      %s265 = smul.addr %s264, 8
      %s266 = scalar_lea.vmem %s2, %s265
      // Predicated region
      $region29: #{tpu_custom_call.1} parent=27 // pred_check
        %p267 = pneg %p78
      $region30: #{tpu_custom_call.1} parent=27 // pred_check_branch
        %269 = sbr.rel (%p267) target = $region32
      $region31: #{tpu_custom_call.1} parent=27 // pred_region
        %s270 = smul.u32 4, %s13
      $region32: #{tpu_custom_call.1} parent=27 // pred_fallthru
        _
    $region28: #{tpu_custom_call.1} parent=5 // pred_fallthru
      _
    %p271 = scmp.le.s32.totalorder 2, %s8
    // Predicated region
    $region33: #{tpu_custom_call.1} parent=5 // pred_check
      %p272 = pneg %p271
    $region34: #{tpu_custom_call.1} parent=5 // pred_check_branch
      %274 = sbr.rel (%p272) target = $region36
    $region35: #{tpu_custom_call.1} parent=5 // pred_region
      %s275 = ssub.s32 %s8, 2
      // Predicated region
      $region37: #{tpu_custom_call.1} parent=35 // pred_check
        %p276 = pneg %p84
      $region38: #{tpu_custom_call.1} parent=35 // pred_check_branch
        %278 = sbr.rel (%p276) target = $region40
      $region39: #{tpu_custom_call.1} parent=35 // pred_region
        %s279 = smul.u32 4, %s14
        %p280 = scmp.lt.s32.totalorder %s279, 7
        %s281 = scalar_select %p280, %s279, 7
        %s282 = smul.addr %s281, 8
        %s283 = scalar_lea.vmem %s2, %s282
      $region40: #{tpu_custom_call.1} parent=35 // pred_fallthru
        _
    $region36: #{tpu_custom_call.1} parent=5 // pred_fallthru
      _
  $region6: #{tpu_custom_call.1} parent=0 // loop_footer
    %s12 = sadd.s32 1, %s8
  $region7: #{tpu_custom_call.1} parent=0 // loop_footer_branch
    %7 = sbr.rel target = $region3
  $region8: #{tpu_custom_call.1} parent=0 // loop_exit
    _

</llo_original>
